<compile_context>
chip_gen: v7x
topology: tpu7x:2x2x1
jax: 0.10.0
libtpu: 0.0.40
codegen_flags: <defaults>
</compile_context>

<pallas_src>
import jax
import jax.numpy as jnp
from jax.experimental import pallas as pl
from jax.experimental.pallas import tpu as pltpu


# ---------------------------------------------------------------------------
# Default operator / noise / sensor models (identity, as in Physics.__init__)
# ---------------------------------------------------------------------------
def _identity(x):
    return x


# TODO(synk): stochastic noise models (Gaussian/Poisson) need PRNG plumbing
# (pltpu.prng_seed / prng_random_bits); only deterministic fns supported here.
# TODO(synk): Physics.A_dagger (gradient-descent pseudoinverse with a torch
# optimizer loop) is a host-side optimization loop, not a single forward hot
# path; it is not implemented as a Pallas kernel here.


def _make_physics_kernel(A_fn, noise_fn, sensor_fn):
    """Fused elementwise kernel body  y = sensor(noise(A(x)))."""

    def kernel(x_ref, y_ref):
        y_ref[...] = sensor_fn(noise_fn(A_fn(x_ref[...]))).astype(y_ref.dtype)

    return kernel


_LANES = (1024, 512, 256, 128)   # lane-dense candidates (multiples of 128)
_SUBLANE = 32                    # row multiple safe for f32 / bf16 / int8 packing
_TARGET_BLOCK_BYTES = 4 << 20    # ~4 MiB blocks: amortizes per-step overhead
_MIN_GRID_STEPS = 8              # >= 4 pipelined steps per TensorCore on v7x


def _physics_forward_impl(x, A_fn, noise_fn, sensor_fn):
    orig_shape = x.shape
    orig_dtype = x.dtype
    total = int(x.size)
    if total == 0:
        return x
    itemsize = jnp.dtype(orig_dtype).itemsize

    # Pick the widest lane dim that divides numel -> zero-copy reshape.
    lane = None
    for cand in _LANES:
        if total % cand == 0:
            lane = cand
            break
    pad = 0
    if lane is None:
        # TODO(synk): a masked in-kernel tail store would avoid this host-side
        # copy; only reached when numel is not a multiple of 128 (rare).
        lane = _LANES[-1]
        pad = (-total) % lane

    x_flat = x.reshape(-1)
    if pad:
        x_flat = jnp.pad(x_flat, (0, pad))
    rows = (total + pad) // lane
    x2d = x_flat.reshape(rows, lane)

    # ~4 MiB row blocks, multiple of the sublane packing.
    blk = max(_SUBLANE,
              (_TARGET_BLOCK_BYTES // (lane * itemsize)) // _SUBLANE * _SUBLANE)
    # Cap block size so the parallel grid has >= _MIN_GRID_STEPS steps
    # whenever there is enough data (pipelining + dual-TC sharding on v7x).
    if rows > _MIN_GRID_STEPS * _SUBLANE:
        cap = pl.cdiv(pl.cdiv(rows, _MIN_GRID_STEPS), _SUBLANE) * _SUBLANE
        blk = min(blk, cap)
    if blk >= rows:
        blk = rows           # single full-extent block (legal for any rows)
    grid = (pl.cdiv(rows, blk),)

    # in + out, each double-buffered, plus headroom.  Keeps 4 MiB blocks
    # compiling on v5e (16 MiB scoped default) and stays well inside v7x's
    # 64 MiB per-TC physical VMEM.
    blk_bytes = blk * lane * itemsize
    vmem_limit = int(min(64 << 20, max(16 << 20, 5 * blk_bytes)))

    kernel = _make_physics_kernel(A_fn, noise_fn, sensor_fn)
    y2d = pl.pallas_call(
        kernel,
        out_shape=jax.ShapeDtypeStruct((rows, lane), orig_dtype),
        grid=grid,
        in_specs=[pl.BlockSpec((blk, lane), lambda i: (i, 0))],
        out_specs=pl.BlockSpec((blk, lane), lambda i: (i, 0)),
        compiler_params=pltpu.CompilerParams(
            # "parallel" is safe on all generations and lets v7x shard the
            # grid across both TensorCores for this memory-bound pass.
            dimension_semantics=("parallel",),
            vmem_limit_bytes=vmem_limit,
        ),
    )(x2d)

    y_flat = y2d.reshape(-1)
    if pad:
        y_flat = y_flat[:total]
    return y_flat.reshape(orig_shape)


# jit so reshapes are free bitcasts and the whole forward is a single dispatch;
# the user callables are static args (retrace per distinct callable object).
_physics_forward_pallas = jax.jit(_physics_forward_impl, static_argnums=(1, 2, 3))


def physics_forward(x, A_fn=_identity, noise_fn=_identity, sensor_fn=_identity):
    """Pallas equivalent of Physics.forward for elementwise A/noise/sensor.

    x: jnp array of any shape (e.g. NCHW). Returns y with same shape/dtype.
    The default (all-identity) composition is short-circuited: it returns x
    directly, avoiding a pointless full-tensor HBM read+write.
    """
    if A_fn is _identity and noise_fn is _identity and sensor_fn is _identity:
        return x
    return _physics_forward_pallas(x, A_fn, noise_fn, sensor_fn)


if __name__ == "__main__":
    key = jax.random.PRNGKey(0)
    k1, k2, k3 = jax.random.split(key, 3)

    # Small NCHW image batch, consistent with an image forward operator.
    x = jax.random.normal(k1, (2, 4, 16, 16), dtype=jnp.float32)

    # 1) Default Physics(): identity forward, short-circuited (no kernel).
    y_default = physics_forward(x)
    assert y_default.shape == x.shape and y_default.dtype == x.dtype
    assert bool(jnp.array_equal(y_default, x))

    # 2) Force the fused Pallas path with identity fns; must be bit-exact.
    y_id = jax.block_until_ready(
        _physics_forward_pallas(x, _identity, _identity, _identity))
    assert y_id.shape == x.shape and y_id.dtype == x.dtype
    assert bool(jnp.array_equal(y_id, x))

    # 3) Non-identity elementwise composition (zero-copy 1024-lane path):
    #    A = 0.5 * x (scaling operator), sensor = saturation (clip).
    A_fn = lambda z: 0.5 * z
    sensor_fn = lambda z: jnp.clip(z, -1.0, 1.0)
    y = jax.block_until_ready(physics_forward(x, A_fn=A_fn, sensor_fn=sensor_fn))
    ref = jnp.clip(0.5 * x, -1.0, 1.0)
    assert y.shape == x.shape and y.dtype == x.dtype
    assert bool(jnp.allclose(y, ref, atol=1e-6, rtol=1e-6))

    # 4) numel a multiple of 128 but not 1024: zero-copy narrower-lane path.
    x2 = jax.random.normal(k2, (3, 5, 16, 16), dtype=jnp.float32)   # 3840 elems
    y2 = jax.block_until_ready(physics_forward(x2, A_fn=A_fn, sensor_fn=sensor_fn))
    assert y2.shape == x2.shape and y2.dtype == x2.dtype
    assert bool(jnp.allclose(y2, jnp.clip(0.5 * x2, -1.0, 1.0), atol=1e-6, rtol=1e-6))

    # 5) Ragged numel (not a multiple of 128): fallback pad path.
    x3 = jax.random.normal(k3, (2, 3, 5, 7), dtype=jnp.float32)     # 210 elems
    noise_fn = lambda z: z + 0.25
    y3 = jax.block_until_ready(physics_forward(x3, A_fn=A_fn, noise_fn=noise_fn))
    assert y3.shape == x3.shape and y3.dtype == x3.dtype
    assert bool(jnp.allclose(y3, 0.5 * x3 + 0.25, atol=1e-6, rtol=1e-6))

    print("KERNEL_OK")
</pallas_src>

<mosaic_0001>
module attributes {stable_mosaic.version = 11 : i64} {
  func.func @kernel(%arg0: i32, %arg1: memref<2x1024xf32, #tpu.memory_space<vmem>>, %arg2: memref<2x1024xf32, #tpu.memory_space<vmem>>) attributes {dimension_semantics = [#tpu.dimension_semantics<parallel>], iteration_bounds = array<i64: 1>, scalar_prefetch = 0 : i64, scratch_operands = 0 : i64, tpu.core_type = #tpu.core_type<tc>, window_params = [{transform_indices = @transform_0, window_bounds = array<i64: 2, 1024>}, {transform_indices = @transform_1, window_bounds = array<i64: 2, 1024>}]} {
    %c0 = arith.constant 0 : index
    %c0_0 = arith.constant 0 : index
    %0 = vector.load %arg1[%c0, %c0_0] : memref<2x1024xf32, #tpu.memory_space<vmem>>, vector<2x1024xf32>
    %c0_1 = arith.constant 0 : index
    %c0_2 = arith.constant 0 : index
    %1 = vector.load %arg2[%c0_1, %c0_2] : memref<2x1024xf32, #tpu.memory_space<vmem>>, vector<2x1024xf32>
    tpu.vector_store %arg2[%c0_1, %c0_2], %0 {strides = array<i32>} : memref<2x1024xf32, #tpu.memory_space<vmem>>, vector<2x1024xf32>,
    return
  }
  func.func @transform_0(%arg0: i32) -> (i32, i32) {
    %c0_i32 = arith.constant 0 : i32
    %c0_i32_0 = arith.constant 0 : i32
    return %arg0, %c0_i32 : i32, i32
  }
  func.func @transform_1(%arg0: i32) -> (i32, i32) {
    %c0_i32 = arith.constant 0 : i32
    %c0_i32_0 = arith.constant 0 : i32
    return %arg0, %c0_i32 : i32, i32
  }
}

</mosaic_0001>

<llo_original>
// kernel: _physics_forward_impl.1
$region0: #{_physics_forward_impl.1}
  #allocation0 [shape = 'u32[]', space=smem, size = 0x4, offset = 0x4, fixed_abs, tag = 'smem constant byte address 0x4 - core index']
  #allocation1 [shape = 'u32[144,128]{1,0:T(1,128)}', space=vmem, size = 0x12000, scoped, tag = 'internal scratch']
  %s0 = inlined_call_operand.vmem [shape: f32[2,1024], index: 0, kind: input, shape index: {}]
  %s1 = inlined_call_operand.vmem [shape: f32[2,1024], index: 1, kind: output, shape index: {}]
  %s2 = sld [smem:[#allocation0]]
  $region14: #{_physics_forward_impl.1} parent=0
    _
  %s4 = ssub.s32 1, %s2
  %s5 = scalar_select 0, %s4, %s2
  // Predicated region
  $region2: #{_physics_forward_impl.1} parent=0 // pred_check
    _
  $region3: #{_physics_forward_impl.1} parent=0 // pred_check_branch
    %7 = sbr.rel (0) target = $region5
  $region4: #{_physics_forward_impl.1} parent=0 // pred_region
    _
  $region5: #{_physics_forward_impl.1} parent=0 // pred_fallthru
    _
  %v8 = vld [vmem:[%s0] sm:$0xff]
  %v9 = vld [vmem:[%s0 + $0x8] sm:$0xff]
  %10 = vst [vmem:[%s1] sm:$0xff] %v8
  %11 = vst [vmem:[%s1 + $0x8] sm:$0xff] %v9
  // Predicated region
  $region6: #{_physics_forward_impl.1} parent=0 // pred_check
    _
  $region7: #{_physics_forward_impl.1} parent=0 // pred_check_branch
    %13 = sbr.rel (0) target = $region9
  $region8: #{_physics_forward_impl.1} parent=0 // pred_region
    _
  $region9: #{_physics_forward_impl.1} parent=0 // pred_fallthru
    _
  // Predicated region
  $region10: #{_physics_forward_impl.1} parent=0 // pred_check
    _
  $region11: #{_physics_forward_impl.1} parent=0 // pred_check_branch
    %15 = sbr.rel (0) target = $region13
  $region12: #{_physics_forward_impl.1} parent=0 // pred_region
    _
  $region13: #{_physics_forward_impl.1} parent=0 // pred_fallthru
    _

</llo_original>
